<compile_context>
chip_gen: v7x
topology: tpu7x:2x2x1
jax: 0.10.0
libtpu: 0.0.40
codegen_flags: <defaults>
</compile_context>

<pallas_src>
import jax
import jax.numpy as jnp
from jax.experimental import pallas as pl
from jax.experimental.pallas import tpu as pltpu

BN_EPS = 1e-5


# ---------------------------------------------------------------------------
# Kernel
# ---------------------------------------------------------------------------
def _residual_mlp_kernel(x_ref, w1_ref, b1_ref, w2_ref, b2_ref, o_ref):
    x = x_ref[...]                                        # (bm, dim) residual path
    x_f32 = x.astype(jnp.float32)

    # Linear 1 (BN1 pre-folded into W1'/b1'), f32 accumulation on the MXU.
    h = jnp.dot(x.astype(w1_ref.dtype), w1_ref[...],
                preferred_element_type=jnp.float32) + b1_ref[...]
    h = jnp.maximum(h, 0.0)                               # ReLU (Dropout = identity in eval)

    # Linear 2 (BN2 pre-folded into W2'/b2').
    y = jnp.dot(h.astype(w2_ref.dtype), w2_ref[...],
                preferred_element_type=jnp.float32) + b2_ref[...]

    # Residual add (f32) + final ReLU, cast to output dtype.
    o_ref[...] = jnp.maximum(x_f32 + y, 0.0).astype(o_ref.dtype)


# ---------------------------------------------------------------------------
# Wrapper helpers
# ---------------------------------------------------------------------------
def _fold_bn_into_linear(w, b, gamma, beta, mean, var, eps=BN_EPS):
    """Fold an eval-mode BatchNorm1d into the preceding Linear.

    w: (out, in) PyTorch layout.  Returns (in, out) pre-transposed weight + fused bias.
    """
    s = gamma / jnp.sqrt(var + eps)                       # (out,)
    w_t = w.T * s[None, :]                                # (in, out)
    b_f = (b - mean) * s + beta                           # (out,)
    return w_t, b_f


def _round_up(a, m):
    return ((a + m - 1) // m) * m


def _vmem_budget_bytes():
    """~75% of physical per-core VMEM (leaves headroom for Mosaic scratch/spill)."""
    cap = 128 * 1024 * 1024
    try:
        info = pltpu.get_tpu_info()
        cap = int(getattr(info, "vmem_capacity_bytes", cap))
    except Exception:
        pass
    return (cap * 3) // 4


def _pick_block_rows(n, dim, act_bytes, out_bytes, w_bytes, budget, block_rows):
    """Largest batch tile that (a) fits the VMEM budget and (b) avoids dead padding."""
    n8 = _round_up(n, 8)
    resident = 2 * dim * dim * w_bytes + 2 * dim * 4      # single-buffered weights+biases
    per_row = 2 * dim * (act_bytes + out_bytes)           # double-buffered x & out tiles
    cap = max((budget - resident) // per_row, 8)
    limit = int(min(block_rows, cap))
    if n8 <= limit:
        return n8                                         # single tile, <=7 padded rows
    if limit >= 256:
        return (limit // 256) * 256                       # fill the 256-wide MXU M dim
    return max((limit // 8) * 8, 8)


def _resident_spec(shape):
    """Constant-index block: single-buffer it (double-buffering buys nothing)."""
    index_map = lambda i: (0, 0)
    try:
        return pl.BlockSpec(shape, index_map, pipeline_mode=pl.Buffered(1))
    except TypeError:                                     # older jax without pipeline_mode
        return pl.BlockSpec(shape, index_map)


# ---------------------------------------------------------------------------
# Wrapper
# ---------------------------------------------------------------------------
def residual_mlp_block(x, params, *, block_rows=1024, compute_dtype=jnp.bfloat16,
                       out_dtype=None):
    """Eval-mode ResidualMLPBlock forward.  x: (N, dim)."""
    n, dim = x.shape
    out_dtype = x.dtype if out_dtype is None else out_dtype

    # --- fold BN into the linears, cast weights to the MXU compute dtype ---
    w1p, b1p = _fold_bn_into_linear(params["w1"], params["b1"], params["g1"],
                                    params["be1"], params["m1"], params["v1"])
    w2p, b2p = _fold_bn_into_linear(params["w2"], params["b2"], params["g2"],
                                    params["be2"], params["m2"], params["v2"])
    w1p = w1p.astype(compute_dtype)
    w2p = w2p.astype(compute_dtype)
    b1p = b1p.reshape(1, dim).astype(jnp.float32)
    b2p = b2p.reshape(1, dim).astype(jnp.float32)

    # --- batch tiling: no wrapper pad, ragged last block handled by Pallas ---
    act_bytes = jnp.dtype(x.dtype).itemsize
    out_bytes = jnp.dtype(out_dtype).itemsize
    w_bytes = jnp.dtype(compute_dtype).itemsize
    budget = _vmem_budget_bytes()
    bm = _pick_block_rows(n, dim, act_bytes, out_bytes, w_bytes, budget, block_rows)
    grid = (pl.cdiv(n, bm),)

    row_spec_in = pl.BlockSpec((bm, dim), lambda i: (i, 0))   # batch tiles stream through
    row_spec_out = pl.BlockSpec((bm, dim), lambda i: (i, 0))
    mat_spec = _resident_spec((dim, dim))                     # weights stay resident
    vec_spec = _resident_spec((1, dim))                       # fused biases, resident

    cost = pl.CostEstimate(
        flops=4 * n * dim * dim,                              # two (n,dim)x(dim,dim) matmuls
        transcendentals=0,
        bytes_accessed=n * dim * (act_bytes + out_bytes)
                       + 2 * dim * dim * w_bytes + 8 * dim,
    )

    return pl.pallas_call(
        _residual_mlp_kernel,
        out_shape=jax.ShapeDtypeStruct((n, dim), out_dtype),
        grid_spec=pltpu.PrefetchScalarGridSpec(
            num_scalar_prefetch=0,
            grid=grid,
            in_specs=[row_spec_in, mat_spec, vec_spec, mat_spec, vec_spec],
            out_specs=row_spec_out,
        ),
        compiler_params=pltpu.CompilerParams(
            dimension_semantics=("parallel",),
            vmem_limit_bytes=int(budget),
        ),
        cost_estimate=cost,
    )(x, w1p, b1p, w2p, b2p)


# ---------------------------------------------------------------------------
# Parameters / reference
# ---------------------------------------------------------------------------
def init_params(key, dim):
    """Deterministic params matching the PyTorch module's shapes (eval mode)."""
    k = jax.random.split(key, 12)
    bound = 1.0 / (dim ** 0.5)                            # nn.Linear default range
    w1 = jax.random.uniform(k[0], (dim, dim), jnp.float32, -bound, bound)   # (out, in)
    b1 = jax.random.uniform(k[1], (dim,), jnp.float32, -bound, bound)
    w2 = jax.random.uniform(k[2], (dim, dim), jnp.float32, -bound, bound)
    b2 = jax.random.uniform(k[3], (dim,), jnp.float32, -bound, bound)
    m1 = 0.1 * jax.random.normal(k[4], (dim,), jnp.float32)
    v1 = 1.0 + 0.1 * jnp.abs(jax.random.normal(k[5], (dim,), jnp.float32))
    g1 = 1.0 + 0.1 * jax.random.normal(k[6], (dim,), jnp.float32)
    be1 = 0.1 * jax.random.normal(k[7], (dim,), jnp.float32)
    m2 = 0.1 * jax.random.normal(k[8], (dim,), jnp.float32)
    v2 = 1.0 + 0.1 * jnp.abs(jax.random.normal(k[9], (dim,), jnp.float32))
    g2 = 1.0 + 0.1 * jax.random.normal(k[10], (dim,), jnp.float32)
    be2 = 0.1 * jax.random.normal(k[11], (dim,), jnp.float32)
    return dict(w1=w1, b1=b1, g1=g1, be1=be1, m1=m1, v1=v1,
                w2=w2, b2=b2, g2=g2, be2=be2, m2=m2, v2=v2)


def _reference(x, p):
    """Pure-JAX reference of the eval-mode forward pass (unfolded BN)."""
    h = x @ p["w1"].T + p["b1"]
    h = (h - p["m1"]) / jnp.sqrt(p["v1"] + BN_EPS) * p["g1"] + p["be1"]
    h = jnp.maximum(h, 0.0)
    y = h @ p["w2"].T + p["b2"]
    y = (y - p["m2"]) / jnp.sqrt(p["v2"] + BN_EPS) * p["g2"] + p["be2"]
    return jnp.maximum(x + y, 0.0)


# ---------------------------------------------------------------------------
if __name__ == "__main__":
    key = jax.random.PRNGKey(0)
    kx, kx2, kp = jax.random.split(key, 3)

    DIM = 256
    params = init_params(kp, DIM)

    # --- Case 1: small odd N -> single tile, no padding waste ---
    N = 272
    x = jax.random.normal(kx, (N, DIM), jnp.float32)
    ref = _reference(x, params)

    out_bf16 = jax.block_until_ready(residual_mlp_block(x, params))
    assert out_bf16.shape == (N, DIM) and out_bf16.dtype == jnp.float32
    assert jnp.allclose(out_bf16, ref, atol=2e-2, rtol=2e-2), "bf16-weight path mismatch"

    out_f32 = jax.block_until_ready(
        residual_mlp_block(x, params, compute_dtype=jnp.float32))
    assert jnp.allclose(out_f32, ref, atol=1e-3, rtol=1e-3), "f32-weight path mismatch"

    # bf16 activations in/out (v5e/v6e memory-bound option), f32 residual inside kernel.
    x_bf16 = x.astype(jnp.bfloat16)
    ref_bf16 = _reference(x_bf16.astype(jnp.float32), params)
    out_act_bf16 = jax.block_until_ready(
        residual_mlp_block(x_bf16, params, out_dtype=jnp.bfloat16))
    assert out_act_bf16.dtype == jnp.bfloat16
    assert jnp.allclose(out_act_bf16.astype(jnp.float32), ref_bf16,
                        atol=5e-2, rtol=5e-2), "bf16 I/O path mismatch"

    # --- Case 2: multi-tile grid with ragged last block (no wrapper padding) ---
    N2 = 600
    x2 = jax.random.normal(kx2, (N2, DIM), jnp.float32)
    ref2 = _reference(x2, params)
    out2 = jax.block_until_ready(residual_mlp_block(x2, params, block_rows=256))
    assert out2.shape == (N2, DIM)
    assert jnp.allclose(out2, ref2, atol=2e-2, rtol=2e-2), "multi-tile path mismatch"

    print("KERNEL_OK")
</pallas_src>

<mosaic_0001>
module attributes {stable_mosaic.version = 11 : i64} {
  func.func @_residual_mlp_kernel(%arg0: i32, %arg1: memref<272x256xf32, #tpu.memory_space<vmem>>, %arg2: memref<256x256xbf16, #tpu.memory_space<vmem>>, %arg3: memref<1x256xf32, #tpu.memory_space<vmem>>, %arg4: memref<256x256xbf16, #tpu.memory_space<vmem>>, %arg5: memref<1x256xf32, #tpu.memory_space<vmem>>, %arg6: memref<272x256xf32, #tpu.memory_space<vmem>>) attributes {dimension_semantics = [#tpu.dimension_semantics<parallel>], iteration_bounds = array<i64: 1>, scalar_prefetch = 0 : i64, scratch_operands = 0 : i64, tpu.core_type = #tpu.core_type<tc>, window_params = [{transform_indices = @transform_0, window_bounds = array<i64: 272, 256>}, {pipeline_mode = #tpu.pipeline_mode<synchronous>, transform_indices = @transform_1, window_bounds = array<i64: 256, 256>}, {pipeline_mode = #tpu.pipeline_mode<synchronous>, transform_indices = @transform_2, window_bounds = array<i64: 1, 256>}, {pipeline_mode = #tpu.pipeline_mode<synchronous>, transform_indices = @transform_3, window_bounds = array<i64: 256, 256>}, {pipeline_mode = #tpu.pipeline_mode<synchronous>, transform_indices = @transform_4, window_bounds = array<i64: 1, 256>}, {transform_indices = @transform_5, window_bounds = array<i64: 272, 256>}]} {
    %c0 = arith.constant 0 : index
    %c0_0 = arith.constant 0 : index
    %0 = vector.load %arg1[%c0, %c0_0] : memref<272x256xf32, #tpu.memory_space<vmem>>, vector<272x256xf32>
    %1 = arith.truncf %0 : vector<272x256xf32> to vector<272x256xbf16>
    %c0_1 = arith.constant 0 : index
    %c0_2 = arith.constant 0 : index
    %2 = vector.load %arg2[%c0_1, %c0_2] : memref<256x256xbf16, #tpu.memory_space<vmem>>, vector<256x256xbf16>
    %cst = arith.constant dense<0.000000e+00> : vector<272x256xf32>
    %3 = tpu.matmul %1, %2, %cst {dimension_numbers = #tpu.dot_dimension_numbers<[1], [0], [0], [1], [0, 0, 1, 1], [], []>} : vector<272x256xbf16>, vector<256x256xbf16>, vector<272x256xf32> -> vector<272x256xf32>
    %c0_3 = arith.constant 0 : index
    %c0_4 = arith.constant 0 : index
    %4 = vector.load %arg3[%c0_3, %c0_4] : memref<1x256xf32, #tpu.memory_space<vmem>>, vector<1x256xf32>
    %5 = vector.broadcast %4 : vector<1x256xf32> to vector<272x256xf32>
    %6 = arith.addf %3, %5 : vector<272x256xf32>
    %cst_5 = arith.constant 0.000000e+00 : f32
    %7 = vector.broadcast %cst_5 : f32 to vector<272x256xf32>
    %8 = arith.maximumf %6, %7 : vector<272x256xf32>
    %9 = arith.truncf %8 : vector<272x256xf32> to vector<272x256xbf16>
    %c0_6 = arith.constant 0 : index
    %c0_7 = arith.constant 0 : index
    %10 = vector.load %arg4[%c0_6, %c0_7] : memref<256x256xbf16, #tpu.memory_space<vmem>>, vector<256x256xbf16>
    %cst_8 = arith.constant dense<0.000000e+00> : vector<272x256xf32>
    %11 = tpu.matmul %9, %10, %cst_8 {dimension_numbers = #tpu.dot_dimension_numbers<[1], [0], [0], [1], [0, 0, 1, 1], [], []>} : vector<272x256xbf16>, vector<256x256xbf16>, vector<272x256xf32> -> vector<272x256xf32>
    %c0_9 = arith.constant 0 : index
    %c0_10 = arith.constant 0 : index
    %12 = vector.load %arg5[%c0_9, %c0_10] : memref<1x256xf32, #tpu.memory_space<vmem>>, vector<1x256xf32>
    %13 = vector.broadcast %12 : vector<1x256xf32> to vector<272x256xf32>
    %14 = arith.addf %11, %13 : vector<272x256xf32>
    %15 = arith.addf %0, %14 : vector<272x256xf32>
    %cst_11 = arith.constant 0.000000e+00 : f32
    %16 = vector.broadcast %cst_11 : f32 to vector<272x256xf32>
    %17 = arith.maximumf %15, %16 : vector<272x256xf32>
    %c0_12 = arith.constant 0 : index
    %c0_13 = arith.constant 0 : index
    %18 = vector.load %arg6[%c0_12, %c0_13] : memref<272x256xf32, #tpu.memory_space<vmem>>, vector<272x256xf32>
    tpu.vector_store %arg6[%c0_12, %c0_13], %17 {strides = array<i32>} : memref<272x256xf32, #tpu.memory_space<vmem>>, vector<272x256xf32>,
    return
  }
  func.func @transform_0(%arg0: i32) -> (i32, i32) {
    %c0_i32 = arith.constant 0 : i32
    %c0_i32_0 = arith.constant 0 : i32
    return %arg0, %c0_i32 : i32, i32
  }
  func.func @transform_1(%arg0: i32) -> (i32, i32) {
    %c0_i32 = arith.constant 0 : i32
    %c0_i32_0 = arith.constant 0 : i32
    %c0_i32_1 = arith.constant 0 : i32
    return %c0_i32, %c0_i32_0 : i32, i32
  }
  func.func @transform_2(%arg0: i32) -> (i32, i32) {
    %c0_i32 = arith.constant 0 : i32
    %c0_i32_0 = arith.constant 0 : i32
    %c0_i32_1 = arith.constant 0 : i32
    return %c0_i32, %c0_i32_0 : i32, i32
  }
  func.func @transform_3(%arg0: i32) -> (i32, i32) {
    %c0_i32 = arith.constant 0 : i32
    %c0_i32_0 = arith.constant 0 : i32
    %c0_i32_1 = arith.constant 0 : i32
    return %c0_i32, %c0_i32_0 : i32, i32
  }
  func.func @transform_4(%arg0: i32) -> (i32, i32) {
    %c0_i32 = arith.constant 0 : i32
    %c0_i32_0 = arith.constant 0 : i32
    %c0_i32_1 = arith.constant 0 : i32
    return %c0_i32, %c0_i32_0 : i32, i32
  }
  func.func @transform_5(%arg0: i32) -> (i32, i32) {
    %c0_i32 = arith.constant 0 : i32
    %c0_i32_0 = arith.constant 0 : i32
    return %arg0, %c0_i32 : i32, i32
  }
}

</mosaic_0001>

<llo_original>
// kernel: tpu_custom_call.1
$region0: #{tpu_custom_call.1}
  #allocation0 [shape = 'u32[]', space=smem, size = 0x4, offset = 0x4, fixed_abs, tag = 'smem constant byte address 0x4 - core index']
  #allocation1 [shape = 'u32[144,128]{1,0:T(1,128)}', space=vmem, size = 0x12000, scoped, tag = 'internal scratch']
  %s0 = inlined_call_operand.hbm [shape: f32[272,256], index: 0, kind: input, shape index: {}]
  %s1 = inlined_call_operand.hbm [shape: bf16[256,256], index: 1, kind: input, shape index: {}]
  %s2 = inlined_call_operand.hbm [shape: f32[1,256], index: 2, kind: input, shape index: {}]
  %s3 = inlined_call_operand.hbm [shape: bf16[256,256], index: 3, kind: input, shape index: {}]
  %s4 = inlined_call_operand.hbm [shape: f32[1,256], index: 4, kind: input, shape index: {}]
  %s5 = inlined_call_operand.hbm [shape: f32[272,256], index: 5, kind: output, shape index: {}]
  %s6 = sld [smem:[#allocation0]]
  $region50: #{tpu_custom_call.1} parent=0
    _
  %s8 = ssub.s32 1, %s6
  %s9 = scalar_select 0, %s8, %s6
  $region1: #{tpu_custom_call.1} parent=0
    #allocation2 [shape = 'u8[278528]{0}', space=vmem, size = 0x44000, scoped, tag = 'input window, operand 0, single buffered']
    #allocation3 [shape = 's32[1]{0}', space=sflag, size = 0x4, scoped, tag = 'scoped memory for tpu_custom_call.1']
    #allocation4 [shape = 's32[1]{0}', space=sflag, size = 0x4, scoped, tag = 'scoped memory for tpu_custom_call.1']
    #allocation5 [shape = 'u8[131072]{0}', space=vmem, size = 0x20000, scoped, tag = 'input window, operand 1, single buffered']
    #allocation6 [shape = 's32[1]{0}', space=sflag, size = 0x4, scoped, tag = 'scoped memory for tpu_custom_call.1']
    #allocation7 [shape = 'u8[1024]{0}', space=vmem, size = 0x400, scoped, tag = 'input window, operand 2, single buffered']
    #allocation8 [shape = 'u8[131072]{0}', space=vmem, size = 0x20000, scoped, tag = 'input window, operand 3, single buffered']
    #allocation9 [shape = 's32[1]{0}', space=sflag, size = 0x4, scoped, tag = 'scoped memory for tpu_custom_call.1']
    #allocation10 [shape = 'u8[1024]{0}', space=vmem, size = 0x400, scoped, tag = 'input window, operand 4, single buffered']
    #allocation11 [shape = 'u8[278528]{0}', space=vmem, size = 0x44000, scoped, tag = 'output window, operand 0, single buffered']
    %10 = vsyncpa [#allocation3], 0
    %11 = vsyncpa [#allocation6], 0
    %12 = vsyncpa [#allocation9], 0
    %13 = vsyncpa [#allocation4], 0
    // Predicated region
    $region2: #{tpu_custom_call.1} parent=1 // pred_check
      _
    $region3: #{tpu_custom_call.1} parent=1 // pred_check_branch
      %15 = sbr.rel (0) target = $region5
    $region4: #{tpu_custom_call.1} parent=1 // pred_region
      %s17 = ssub.s32 8704, 8704
      %18 = vsyncadd [#allocation3], %s17
      %s19 = sshll.u32 [#allocation2], 4
      %s20 = int_to_ptr.vmem [resolvable:$true] %s19
      %25 = dma.hbm_to_vmem [thread:$0]  %s0, 8704, %s20, [#allocation3], 256, 256, 16
    $region5: #{tpu_custom_call.1} parent=1 // pred_fallthru
      _
    // Predicated region
    $region6: #{tpu_custom_call.1} parent=1 // pred_check
      _
    $region7: #{tpu_custom_call.1} parent=1 // pred_check_branch
      %27 = sbr.rel (0) target = $region9
    $region8: #{tpu_custom_call.1} parent=1 // pred_region
      %s29 = ssub.s32 4096, 4096
      %30 = vsyncadd [#allocation6], %s29
      %s31 = sshll.u32 [#allocation5], 4
      %s32 = int_to_ptr.vmem [resolvable:$true] %s31
      %37 = dma.hbm_to_vmem [thread:$0]  %s1, 4096, %s32, [#allocation6], 128, 128, 8
    $region9: #{tpu_custom_call.1} parent=1 // pred_fallthru
      _
    // Predicated region
    $region10: #{tpu_custom_call.1} parent=1 // pred_check
      _
    $region11: #{tpu_custom_call.1} parent=1 // pred_check_branch
      %39 = sbr.rel (0) target = $region13
    $region12: #{tpu_custom_call.1} parent=1 // pred_region
      %s41 = ssub.s32 32, 32
      %42 = vsyncadd [#allocation6], %s41
      %s44 = sshll.u32 [#allocation7], 4
      %s45 = int_to_ptr.vmem [resolvable:$true] %s44
      %47 = dma.hbm_to_vmem [thread:$0]  %s2, 32, %s45, [#allocation6]
    $region13: #{tpu_custom_call.1} parent=1 // pred_fallthru
      _
    // Predicated region
    $region14: #{tpu_custom_call.1} parent=1 // pred_check
      _
    $region15: #{tpu_custom_call.1} parent=1 // pred_check_branch
      %49 = sbr.rel (0) target = $region17
    $region16: #{tpu_custom_call.1} parent=1 // pred_region
      %s51 = ssub.s32 4096, 4096
      %52 = vsyncadd [#allocation9], %s51
      %s53 = sshll.u32 [#allocation8], 4
      %s54 = int_to_ptr.vmem [resolvable:$true] %s53
      %59 = dma.hbm_to_vmem [thread:$0]  %s3, 4096, %s54, [#allocation9], 128, 128, 8
    $region17: #{tpu_custom_call.1} parent=1 // pred_fallthru
      _
    // Predicated region
    $region18: #{tpu_custom_call.1} parent=1 // pred_check
      _
    $region19: #{tpu_custom_call.1} parent=1 // pred_check_branch
      %61 = sbr.rel (0) target = $region21
    $region20: #{tpu_custom_call.1} parent=1 // pred_region
      %s63 = ssub.s32 32, 32
      %64 = vsyncadd [#allocation9], %s63
      %s66 = sshll.u32 [#allocation10], 4
      %s67 = int_to_ptr.vmem [resolvable:$true] %s66
      %69 = dma.hbm_to_vmem [thread:$0]  %s4, 32, %s67, [#allocation9]
    $region21: #{tpu_custom_call.1} parent=1 // pred_fallthru
      _
    // Predicated region
    $region22: #{tpu_custom_call.1} parent=1 // pred_check
      _
    $region23: #{tpu_custom_call.1} parent=1 // pred_check_branch
      %71 = sbr.rel (0) target = $region25
    $region24: #{tpu_custom_call.1} parent=1 // pred_region
      %72 = dma.done [#allocation3], 8704
    $region25: #{tpu_custom_call.1} parent=1 // pred_fallthru
      _
    // Predicated region
    $region26: #{tpu_custom_call.1} parent=1 // pred_check
      _
    $region27: #{tpu_custom_call.1} parent=1 // pred_check_branch
      %74 = sbr.rel (0) target = $region29
    $region28: #{tpu_custom_call.1} parent=1 // pred_region
      %75 = dma.done [#allocation6], 4096
    $region29: #{tpu_custom_call.1} parent=1 // pred_fallthru
      _
    // Predicated region
    $region30: #{tpu_custom_call.1} parent=1 // pred_check
      _
    $region31: #{tpu_custom_call.1} parent=1 // pred_check_branch
      %77 = sbr.rel (0) target = $region33
    $region32: #{tpu_custom_call.1} parent=1 // pred_region
      %78 = dma.done [#allocation6], 32
    $region33: #{tpu_custom_call.1} parent=1 // pred_fallthru
      _
    // Predicated region
    $region34: #{tpu_custom_call.1} parent=1 // pred_check
      _
    $region35: #{tpu_custom_call.1} parent=1 // pred_check_branch
      %80 = sbr.rel (0) target = $region37
    $region36: #{tpu_custom_call.1} parent=1 // pred_region
      %81 = dma.done [#allocation9], 4096
    $region37: #{tpu_custom_call.1} parent=1 // pred_fallthru
      _
    // Predicated region
    $region38: #{tpu_custom_call.1} parent=1 // pred_check
      _
    $region39: #{tpu_custom_call.1} parent=1 // pred_check_branch
      %83 = sbr.rel (0) target = $region41
    $region40: #{tpu_custom_call.1} parent=1 // pred_region
      %84 = dma.done [#allocation9], 32
    $region41: #{tpu_custom_call.1} parent=1 // pred_fallthru
      _
    %v85 = vld [vmem:[#allocation2] sm:$0xff]
    %v86 = vld [vmem:[#allocation2 + $0x8] sm:$0xff]
    %v87 = vld [vmem:[#allocation2 + $0x10] sm:$0xff]
    %v88 = vld [vmem:[#allocation2 + $0x18] sm:$0xff]
    %v89 = vld [vmem:[#allocation2 + $0x20] sm:$0xff]
    %v90 = vld [vmem:[#allocation2 + $0x28] sm:$0xff]
    %v91 = vld [vmem:[#allocation2 + $0x30] sm:$0xff]
    %v92 = vld [vmem:[#allocation2 + $0x38] sm:$0xff]
    %v93 = vld [vmem:[#allocation2 + $0x40] sm:$0xff]
    %v94 = vld [vmem:[#allocation2 + $0x48] sm:$0xff]
    %v95 = vld [vmem:[#allocation2 + $0x50] sm:$0xff]
    %v96 = vld [vmem:[#allocation2 + $0x58] sm:$0xff]
    %v97 = vld [vmem:[#allocation2 + $0x60] sm:$0xff]
    %v98 = vld [vmem:[#allocation2 + $0x68] sm:$0xff]
    %v99 = vld [vmem:[#allocation2 + $0x70] sm:$0xff]
    %v100 = vld [vmem:[#allocation2 + $0x78] sm:$0xff]
    %v101 = vld [vmem:[#allocation2 + $0x80] sm:$0xff]
    %v102 = vld [vmem:[#allocation2 + $0x88] sm:$0xff]
    %v103 = vld [vmem:[#allocation2 + $0x90] sm:$0xff]
    %v104 = vld [vmem:[#allocation2 + $0x98] sm:$0xff]
    %v105 = vld [vmem:[#allocation2 + $0xa0] sm:$0xff]
    %v106 = vld [vmem:[#allocation2 + $0xa8] sm:$0xff]
    %v107 = vld [vmem:[#allocation2 + $0xb0] sm:$0xff]
    %v108 = vld [vmem:[#allocation2 + $0xb8] sm:$0xff]
    %v109 = vld [vmem:[#allocation2 + $0xc0] sm:$0xff]
    %v110 = vld [vmem:[#allocation2 + $0xc8] sm:$0xff]
    %v111 = vld [vmem:[#allocation2 + $0xd0] sm:$0xff]
    %v112 = vld [vmem:[#allocation2 + $0xd8] sm:$0xff]
    %v113 = vld [vmem:[#allocation2 + $0xe0] sm:$0xff]
    %v114 = vld [vmem:[#allocation2 + $0xe8] sm:$0xff]
    %v115 = vld [vmem:[#allocation2 + $0xf0] sm:$0xff]
    %v116 = vld [vmem:[#allocation2 + $0xf8] sm:$0xff]
    %v117 = vld [vmem:[#allocation2 + $0x100] sm:$0xff]
    %v118 = vld [vmem:[#allocation2 + $0x108] sm:$0xff]
    %v119 = vld [vmem:[#allocation2 + $0x110] sm:$0xff]
    %v120 = vld [vmem:[#allocation2 + $0x118] sm:$0xff]
    %v121 = vld [vmem:[#allocation2 + $0x120] sm:$0xff]
    %v122 = vld [vmem:[#allocation2 + $0x128] sm:$0xff]
    %v123 = vld [vmem:[#allocation2 + $0x130] sm:$0xff]
    %v124 = vld [vmem:[#allocation2 + $0x138] sm:$0xff]
    %v125 = vld [vmem:[#allocation2 + $0x140] sm:$0xff]
    %v126 = vld [vmem:[#allocation2 + $0x148] sm:$0xff]
    %v127 = vld [vmem:[#allocation2 + $0x150] sm:$0xff]
    %v128 = vld [vmem:[#allocation2 + $0x158] sm:$0xff]
    %v129 = vld [vmem:[#allocation2 + $0x160] sm:$0xff]
    %v130 = vld [vmem:[#allocation2 + $0x168] sm:$0xff]
    %v131 = vld [vmem:[#allocation2 + $0x170] sm:$0xff]
    %v132 = vld [vmem:[#allocation2 + $0x178] sm:$0xff]
    %v133 = vld [vmem:[#allocation2 + $0x180] sm:$0xff]
    %v134 = vld [vmem:[#allocation2 + $0x188] sm:$0xff]
    %v135 = vld [vmem:[#allocation2 + $0x190] sm:$0xff]
    %v136 = vld [vmem:[#allocation2 + $0x198] sm:$0xff]
    %v137 = vld [vmem:[#allocation2 + $0x1a0] sm:$0xff]
    %v138 = vld [vmem:[#allocation2 + $0x1a8] sm:$0xff]
    %v139 = vld [vmem:[#allocation2 + $0x1b0] sm:$0xff]
    %v140 = vld [vmem:[#allocation2 + $0x1b8] sm:$0xff]
    %v141 = vld [vmem:[#allocation2 + $0x1c0] sm:$0xff]
    %v142 = vld [vmem:[#allocation2 + $0x1c8] sm:$0xff]
    %v143 = vld [vmem:[#allocation2 + $0x1d0] sm:$0xff]
    %v144 = vld [vmem:[#allocation2 + $0x1d8] sm:$0xff]
    %v145 = vld [vmem:[#allocation2 + $0x1e0] sm:$0xff]
    %v146 = vld [vmem:[#allocation2 + $0x1e8] sm:$0xff]
    %v147 = vld [vmem:[#allocation2 + $0x1f0] sm:$0xff]
    %v148 = vld [vmem:[#allocation2 + $0x1f8] sm:$0xff]
    %v149 = vld [vmem:[#allocation2 + $0x200] sm:$0xff]
    %v150 = vld [vmem:[#allocation2 + $0x208] sm:$0xff]
    %v151 = vld [vmem:[#allocation2 + $0x210] sm:$0xff]
    %v152 = vld [vmem:[#allocation2 + $0x218] sm:$0xff]
    %v153 = vpack.c.bf16 %v87, %v85
    %v154 = vpack.c.bf16 %v88, %v86
    %v155 = vpack.c.bf16 %v91, %v89
    %v156 = vpack.c.bf16 %v92, %v90
    %v157 = vpack.c.bf16 %v95, %v93
    %v158 = vpack.c.bf16 %v96, %v94
    %v159 = vpack.c.bf16 %v99, %v97
    %v160 = vpack.c.bf16 %v100, %v98
    %v161 = vpack.c.bf16 %v103, %v101
    %v162 = vpack.c.bf16 %v104, %v102
    %v163 = vpack.c.bf16 %v107, %v105
    %v164 = vpack.c.bf16 %v108, %v106
    %v165 = vpack.c.bf16 %v111, %v109
    %v166 = vpack.c.bf16 %v112, %v110
    %v167 = vpack.c.bf16 %v115, %v113
    %v168 = vpack.c.bf16 %v116, %v114
    %v169 = vpack.c.bf16 %v119, %v117
    %v170 = vpack.c.bf16 %v120, %v118
    %v171 = vpack.c.bf16 %v123, %v121
    %v172 = vpack.c.bf16 %v124, %v122
    %v173 = vpack.c.bf16 %v127, %v125
    %v174 = vpack.c.bf16 %v128, %v126
    %v175 = vpack.c.bf16 %v131, %v129
    %v176 = vpack.c.bf16 %v132, %v130
    %v177 = vpack.c.bf16 %v135, %v133
    %v178 = vpack.c.bf16 %v136, %v134
    %v179 = vpack.c.bf16 %v139, %v137
    %v180 = vpack.c.bf16 %v140, %v138
    %v181 = vpack.c.bf16 %v143, %v141
    %v182 = vpack.c.bf16 %v144, %v142
    %v183 = vpack.c.bf16 %v147, %v145
    %v184 = vpack.c.bf16 %v148, %v146
    %v185 = vpack.c.bf16 %v151, %v149
    %v186 = vpack.c.bf16 %v152, %v150
    %v187 = vld [vmem:[#allocation5] sm:$0xff]
    %v188 = vld [vmem:[#allocation5 + $0x8] sm:$0xff]
    %v189 = vld [vmem:[#allocation5 + $0x10] sm:$0xff]
    %v190 = vld [vmem:[#allocation5 + $0x18] sm:$0xff]
    %v191 = vld [vmem:[#allocation5 + $0x20] sm:$0xff]
    %v192 = vld [vmem:[#allocation5 + $0x28] sm:$0xff]
    %v193 = vld [vmem:[#allocation5 + $0x30] sm:$0xff]
    %v194 = vld [vmem:[#allocation5 + $0x38] sm:$0xff]
    %v195 = vld [vmem:[#allocation5 + $0x40] sm:$0xff]
    %v196 = vld [vmem:[#allocation5 + $0x48] sm:$0xff]
    %v197 = vld [vmem:[#allocation5 + $0x50] sm:$0xff]
    %v198 = vld [vmem:[#allocation5 + $0x58] sm:$0xff]
    %v199 = vld [vmem:[#allocation5 + $0x60] sm:$0xff]
    %v200 = vld [vmem:[#allocation5 + $0x68] sm:$0xff]
    %v201 = vld [vmem:[#allocation5 + $0x70] sm:$0xff]
    %v202 = vld [vmem:[#allocation5 + $0x78] sm:$0xff]
    %v203 = vld [vmem:[#allocation5 + $0x80] sm:$0xff]
    %v204 = vld [vmem:[#allocation5 + $0x88] sm:$0xff]
    %v205 = vld [vmem:[#allocation5 + $0x90] sm:$0xff]
    %v206 = vld [vmem:[#allocation5 + $0x98] sm:$0xff]
    %v207 = vld [vmem:[#allocation5 + $0xa0] sm:$0xff]
    %v208 = vld [vmem:[#allocation5 + $0xa8] sm:$0xff]
    %v209 = vld [vmem:[#allocation5 + $0xb0] sm:$0xff]
    %v210 = vld [vmem:[#allocation5 + $0xb8] sm:$0xff]
    %v211 = vld [vmem:[#allocation5 + $0xc0] sm:$0xff]
    %v212 = vld [vmem:[#allocation5 + $0xc8] sm:$0xff]
    %v213 = vld [vmem:[#allocation5 + $0xd0] sm:$0xff]
    %v214 = vld [vmem:[#allocation5 + $0xd8] sm:$0xff]
    %v215 = vld [vmem:[#allocation5 + $0xe0] sm:$0xff]
    %v216 = vld [vmem:[#allocation5 + $0xe8] sm:$0xff]
    %v217 = vld [vmem:[#allocation5 + $0xf0] sm:$0xff]
    %v218 = vld [vmem:[#allocation5 + $0xf8] sm:$0xff]
    %v219 = vld [vmem:[#allocation7] sm:$0x3]
    %v221 = vlaneseq
    %v222 = vshrl.u32 %v221, 7
    %v223 = vsub.s32 0, %v222
    %v224 = vrot.slane %v219, %v223
    %v225 = vlaneseq
    %v226 = vshrl.u32 %v225, 7
    %v227 = vsub.s32 1, %v226
    %v228 = vrot.slane %v219, %v227
    %v263 = vunpack.c.l.b16 %v187
    %v264 = vunpack.c.h.b16 %v187
    %v265 = vunpack.c.l.b16 %v188
    %v266 = vunpack.c.h.b16 %v188
    %v267 = vunpack.c.l.b16 %v189
    %v268 = vunpack.c.h.b16 %v189
    %v269 = vunpack.c.l.b16 %v190
    %v270 = vunpack.c.h.b16 %v190
    %v271 = vunpack.c.l.b16 %v191
    %v272 = vunpack.c.h.b16 %v191
    %v273 = vunpack.c.l.b16 %v192
    %v274 = vunpack.c.h.b16 %v192
    %v275 = vunpack.c.l.b16 %v193
    %v276 = vunpack.c.h.b16 %v193
    %v277 = vunpack.c.l.b16 %v194
    %v278 = vunpack.c.h.b16 %v194
    %v279 = vunpack.c.l.b16 %v195
    %v280 = vunpack.c.h.b16 %v195
    %v281 = vunpack.c.l.b16 %v196
    %v282 = vunpack.c.h.b16 %v196
    %v283 = vunpack.c.l.b16 %v197
    %v284 = vunpack.c.h.b16 %v197
    %v285 = vunpack.c.l.b16 %v198
    %v286 = vunpack.c.h.b16 %v198
    %v287 = vunpack.c.l.b16 %v199
    %v288 = vunpack.c.h.b16 %v199
    %v289 = vunpack.c.l.b16 %v200
    %v290 = vunpack.c.h.b16 %v200
    %v291 = vunpack.c.l.b16 %v201
    %v292 = vunpack.c.h.b16 %v201
    %v293 = vunpack.c.l.b16 %v202
    %v294 = vunpack.c.h.b16 %v202
    %v295 = vunpack.c.l.b16 %v203
    %v296 = vunpack.c.h.b16 %v203
    %v297 = vunpack.c.l.b16 %v204
    %v298 = vunpack.c.h.b16 %v204
    %v299 = vunpack.c.l.b16 %v205
    %v300 = vunpack.c.h.b16 %v205
    %v301 = vunpack.c.l.b16 %v206
    %v302 = vunpack.c.h.b16 %v206
    %v303 = vunpack.c.l.b16 %v207
    %v304 = vunpack.c.h.b16 %v207
    %v305 = vunpack.c.l.b16 %v208
    %v306 = vunpack.c.h.b16 %v208
    %v307 = vunpack.c.l.b16 %v209
    %v308 = vunpack.c.h.b16 %v209
    %v309 = vunpack.c.l.b16 %v210
    %v310 = vunpack.c.h.b16 %v210
    %v311 = vunpack.c.l.b16 %v211
    %v312 = vunpack.c.h.b16 %v211
    %v313 = vunpack.c.l.b16 %v212
    %v314 = vunpack.c.h.b16 %v212
    %v315 = vunpack.c.l.b16 %v213
    %v316 = vunpack.c.h.b16 %v213
    %v317 = vunpack.c.l.b16 %v214
    %v318 = vunpack.c.h.b16 %v214
    %v319 = vunpack.c.l.b16 %v215
    %v320 = vunpack.c.h.b16 %v215
    %v321 = vunpack.c.l.b16 %v216
    %v322 = vunpack.c.h.b16 %v216
    %v323 = vunpack.c.l.b16 %v217
    %v324 = vunpack.c.h.b16 %v217
    %v325 = vunpack.c.l.b16 %v218
    %v326 = vunpack.c.h.b16 %v218
    %v327 = vpack.c.b16 %v265, %v263
    %v328 = vpack.c.b16 %v266, %v264
    %v329 = vpack.c.b16 %v269, %v267
    %v330 = vpack.c.b16 %v270, %v268
    %v331 = vpack.c.b16 %v273, %v271
    %v332 = vpack.c.b16 %v274, %v272
    %v333 = vpack.c.b16 %v277, %v275
    %v334 = vpack.c.b16 %v278, %v276
    %v335 = vpack.c.b16 %v281, %v279
    %v336 = vpack.c.b16 %v282, %v280
    %v337 = vpack.c.b16 %v285, %v283
    %v338 = vpack.c.b16 %v286, %v284
    %v339 = vpack.c.b16 %v289, %v287
    %v340 = vpack.c.b16 %v290, %v288
    %v341 = vpack.c.b16 %v293, %v291
    %v342 = vpack.c.b16 %v294, %v292
    %v343 = vpack.c.b16 %v297, %v295
    %v344 = vpack.c.b16 %v298, %v296
    %v345 = vpack.c.b16 %v301, %v299
    %v346 = vpack.c.b16 %v302, %v300
    %v347 = vpack.c.b16 %v305, %v303
    %v348 = vpack.c.b16 %v306, %v304
    %v349 = vpack.c.b16 %v309, %v307
    %v350 = vpack.c.b16 %v310, %v308
    %v351 = vpack.c.b16 %v313, %v311
    %v352 = vpack.c.b16 %v314, %v312
    %v353 = vpack.c.b16 %v317, %v315
    %v354 = vpack.c.b16 %v318, %v316
    %v355 = vpack.c.b16 %v321, %v319
    %v356 = vpack.c.b16 %v322, %v320
    %v357 = vpack.c.b16 %v325, %v323
    %v358 = vpack.c.b16 %v326, %v324
    %391 = vmatprep.subr.bf16.mxu0 %v328
    %392 = vmatpush1.bf16.msra.mxu0 %v327
    %393 = vmatprep.subr.bf16.mxu0 %v330
    %394 = vmatpush1.bf16.msra.mxu0 %v329
    %395 = vmatprep.subr.bf16.mxu0 %v332
    %396 = vmatpush1.bf16.msra.mxu0 %v331
    %397 = vmatprep.subr.bf16.mxu0 %v334
    %398 = vmatpush1.bf16.msra.mxu0 %v333
    %399 = vmatprep.subr.bf16.mxu0 %v336
    %400 = vmatpush1.bf16.msra.mxu0 %v335
    %401 = vmatprep.subr.bf16.mxu0 %v338
    %402 = vmatpush1.bf16.msra.mxu0 %v337
    %403 = vmatprep.subr.bf16.mxu0 %v340
    %404 = vmatpush1.bf16.msra.mxu0 %v339
    %405 = vmatprep.subr.bf16.mxu0 %v342
    %406 = vmatpush1.bf16.msra.mxu0 %v341
    %407 = vmatprep.subr.bf16.mxu0 %v344
    %408 = vmatpush1.bf16.msra.mxu0 %v343
    %409 = vmatprep.subr.bf16.mxu0 %v346
    %410 = vmatpush1.bf16.msra.mxu0 %v345
    %411 = vmatprep.subr.bf16.mxu0 %v348
    %412 = vmatpush1.bf16.msra.mxu0 %v347
    %413 = vmatprep.subr.bf16.mxu0 %v350
    %414 = vmatpush1.bf16.msra.mxu0 %v349
    %415 = vmatprep.subr.bf16.mxu0 %v352
    %416 = vmatpush1.bf16.msra.mxu0 %v351
    %417 = vmatprep.subr.bf16.mxu0 %v354
    %418 = vmatpush1.bf16.msra.mxu0 %v353
    %419 = vmatprep.subr.bf16.mxu0 %v356
    %420 = vmatpush1.bf16.msra.mxu0 %v355
    %421 = vmatprep.subr.bf16.mxu0 %v358
    %422 = vmatpush1.bf16.msra.mxu0 %v357
    %423 = vmatprep.mubr.bf16.mxu0 %v154
    %424 = vmatmul.mubr.bf16.gmra.mrb[0].mxu0 %v153
    %v425 = vpop.f32.mrb[0].mxu0
    %v426 = vadd.f32 %v224, %v425
    %v427 = vpop.f32.mrb[0].mxu0
    %v428 = vadd.f32 %v228, %v427
    %v429 = vpop.f32.mrb[0].mxu0
    %v430 = vadd.f32 %v224, %v429
    %v431 = vpop.f32.mrb[0].mxu0
    %v432 = vadd.f32 %v228, %v431
    %433 = vmatprep.mubr.bf16.mxu0 %v156
    %434 = vmatmul.mubr.bf16.gmra.mrb[0].mxu0 %v155
    %v435 = vpop.f32.mrb[0].mxu0
    %v436 = vadd.f32 %v224, %v435
    %v437 = vpop.f32.mrb[0].mxu0
    %v438 = vadd.f32 %v228, %v437
    %v439 = vpop.f32.mrb[0].mxu0
    %v440 = vadd.f32 %v224, %v439
    %v441 = vpop.f32.mrb[0].mxu0
    %v442 = vadd.f32 %v228, %v441
    %443 = vmatprep.mubr.bf16.mxu0 %v158
    %444 = vmatmul.mubr.bf16.gmra.mrb[0].mxu0 %v157
    %v445 = vpop.f32.mrb[0].mxu0
    %v446 = vadd.f32 %v224, %v445
    %v447 = vpop.f32.mrb[0].mxu0
    %v448 = vadd.f32 %v228, %v447
    %v449 = vpop.f32.mrb[0].mxu0
    %v450 = vadd.f32 %v224, %v449
    %v451 = vpop.f32.mrb[0].mxu0
    %v452 = vadd.f32 %v228, %v451
    %453 = vmatprep.mubr.bf16.mxu0 %v160
    %454 = vmatmul.mubr.bf16.gmra.mrb[0].mxu0 %v159
    %v455 = vpop.f32.mrb[0].mxu0
    %v456 = vadd.f32 %v224, %v455
    %v457 = vpop.f32.mrb[0].mxu0
    %v458 = vadd.f32 %v228, %v457
    %v459 = vpop.f32.mrb[0].mxu0
    %v460 = vadd.f32 %v224, %v459
    %v461 = vpop.f32.mrb[0].mxu0
    %v462 = vadd.f32 %v228, %v461
    %463 = vmatprep.mubr.bf16.mxu0 %v162
    %464 = vmatmul.mubr.bf16.gmra.mrb[0].mxu0 %v161
    %v465 = vpop.f32.mrb[0].mxu0
    %v466 = vadd.f32 %v224, %v465
    %v467 = vpop.f32.mrb[0].mxu0
    %v468 = vadd.f32 %v228, %v467
    %v469 = vpop.f32.mrb[0].mxu0
    %v470 = vadd.f32 %v224, %v469
    %v471 = vpop.f32.mrb[0].mxu0
    %v472 = vadd.f32 %v228, %v471
    %473 = vmatprep.mubr.bf16.mxu0 %v164
    %474 = vmatmul.mubr.bf16.gmra.mrb[0].mxu0 %v163
    %v475 = vpop.f32.mrb[0].mxu0
    %v476 = vadd.f32 %v224, %v475
    %v477 = vpop.f32.mrb[0].mxu0
    %v478 = vadd.f32 %v228, %v477
    %v479 = vpop.f32.mrb[0].mxu0
    %v480 = vadd.f32 %v224, %v479
    %v481 = vpop.f32.mrb[0].mxu0
    %v482 = vadd.f32 %v228, %v481
    %483 = vmatprep.mubr.bf16.mxu0 %v166
    %484 = vmatmul.mubr.bf16.gmra.mrb[0].mxu0 %v165
    %v485 = vpop.f32.mrb[0].mxu0
    %v486 = vadd.f32 %v224, %v485
    %v487 = vpop.f32.mrb[0].mxu0
    %v488 = vadd.f32 %v228, %v487
    %v489 = vpop.f32.mrb[0].mxu0
    %v490 = vadd.f32 %v224, %v489
    %v491 = vpop.f32.mrb[0].mxu0
    %v492 = vadd.f32 %v228, %v491
    %493 = vmatprep.mubr.bf16.mxu0 %v168
    %494 = vmatmul.mubr.bf16.gmra.mrb[0].mxu0 %v167
    %v495 = vpop.f32.mrb[0].mxu0
    %v496 = vadd.f32 %v224, %v495
    %v497 = vpop.f32.mrb[0].mxu0
    %v498 = vadd.f32 %v228, %v497
    %v499 = vpop.f32.mrb[0].mxu0
    %v500 = vadd.f32 %v224, %v499
    %v501 = vpop.f32.mrb[0].mxu0
    %v502 = vadd.f32 %v228, %v501
    %503 = vmatprep.mubr.bf16.mxu0 %v170
    %504 = vmatmul.mubr.bf16.gmra.mrb[0].mxu0 %v169
    %v505 = vpop.f32.mrb[0].mxu0
    %v506 = vadd.f32 %v224, %v505
    %v507 = vpop.f32.mrb[0].mxu0
    %v508 = vadd.f32 %v228, %v507
    %v509 = vpop.f32.mrb[0].mxu0
    %v510 = vadd.f32 %v224, %v509
    %v511 = vpop.f32.mrb[0].mxu0
    %v512 = vadd.f32 %v228, %v511
    %513 = vmatprep.mubr.bf16.mxu0 %v172
    %514 = vmatmul.mubr.bf16.gmra.mrb[0].mxu0 %v171
    %v515 = vpop.f32.mrb[0].mxu0
    %v516 = vadd.f32 %v224, %v515
    %v517 = vpop.f32.mrb[0].mxu0
    %v518 = vadd.f32 %v228, %v517
    %v519 = vpop.f32.mrb[0].mxu0
    %v520 = vadd.f32 %v224, %v519
    %v521 = vpop.f32.mrb[0].mxu0
    %v522 = vadd.f32 %v228, %v521
    %523 = vmatprep.mubr.bf16.mxu0 %v174
    %524 = vmatmul.mubr.bf16.gmra.mrb[0].mxu0 %v173
    %v525 = vpop.f32.mrb[0].mxu0
    %v526 = vadd.f32 %v224, %v525
    %v527 = vpop.f32.mrb[0].mxu0
    %v528 = vadd.f32 %v228, %v527
    %v529 = vpop.f32.mrb[0].mxu0
    %v530 = vadd.f32 %v224, %v529
    %v531 = vpop.f32.mrb[0].mxu0
    %v532 = vadd.f32 %v228, %v531
    %533 = vmatprep.mubr.bf16.mxu0 %v176
    %534 = vmatmul.mubr.bf16.gmra.mrb[0].mxu0 %v175
    %v535 = vpop.f32.mrb[0].mxu0
    %v536 = vadd.f32 %v224, %v535
    %v537 = vpop.f32.mrb[0].mxu0
    %v538 = vadd.f32 %v228, %v537
    %v539 = vpop.f32.mrb[0].mxu0
    %v540 = vadd.f32 %v224, %v539
    %v541 = vpop.f32.mrb[0].mxu0
    %v542 = vadd.f32 %v228, %v541
    %543 = vmatprep.mubr.bf16.mxu0 %v178
    %544 = vmatmul.mubr.bf16.gmra.mrb[0].mxu0 %v177
    %v545 = vpop.f32.mrb[0].mxu0
    %v546 = vadd.f32 %v224, %v545
    %v547 = vpop.f32.mrb[0].mxu0
    %v548 = vadd.f32 %v228, %v547
    %v549 = vpop.f32.mrb[0].mxu0
    %v550 = vadd.f32 %v224, %v549
    %v551 = vpop.f32.mrb[0].mxu0
    %v552 = vadd.f32 %v228, %v551
    %553 = vmatprep.mubr.bf16.mxu0 %v180
    %554 = vmatmul.mubr.bf16.gmra.mrb[0].mxu0 %v179
    %v555 = vpop.f32.mrb[0].mxu0
    %v556 = vadd.f32 %v224, %v555
    %v557 = vpop.f32.mrb[0].mxu0
    %v558 = vadd.f32 %v228, %v557
    %v559 = vpop.f32.mrb[0].mxu0
    %v560 = vadd.f32 %v224, %v559
    %v561 = vpop.f32.mrb[0].mxu0
    %v562 = vadd.f32 %v228, %v561
    %563 = vmatprep.mubr.bf16.mxu0 %v182
    %564 = vmatmul.mubr.bf16.gmra.mrb[0].mxu0 %v181
    %v565 = vpop.f32.mrb[0].mxu0
    %v566 = vadd.f32 %v224, %v565
    %v567 = vpop.f32.mrb[0].mxu0
    %v568 = vadd.f32 %v228, %v567
    %v569 = vpop.f32.mrb[0].mxu0
    %v570 = vadd.f32 %v224, %v569
    %v571 = vpop.f32.mrb[0].mxu0
    %v572 = vadd.f32 %v228, %v571
    %573 = vmatprep.mubr.bf16.mxu0 %v184
    %574 = vmatmul.mubr.bf16.gmra.mrb[0].mxu0 %v183
    %v575 = vpop.f32.mrb[0].mxu0
    %v576 = vadd.f32 %v224, %v575
    %v577 = vpop.f32.mrb[0].mxu0
    %v578 = vadd.f32 %v228, %v577
    %v579 = vpop.f32.mrb[0].mxu0
    %v580 = vadd.f32 %v224, %v579
    %v581 = vpop.f32.mrb[0].mxu0
    %v582 = vadd.f32 %v228, %v581
    %583 = vmatprep.mubr.bf16.mxu0 %v186
    %584 = vmatmul.mubr.bf16.gmra.mrb[0].mxu0 %v185
    %v585 = vpop.f32.mrb[0].mxu0
    %v586 = vadd.f32 %v224, %v585
    %v587 = vpop.f32.mrb[0].mxu0
    %v588 = vadd.f32 %v228, %v587
    %v589 = vpop.f32.mrb[0].mxu0
    %v590 = vadd.f32 %v224, %v589
    %v591 = vpop.f32.mrb[0].mxu0
    %v592 = vadd.f32 %v228, %v591
    %593 = vdwg.mxu0
    %v594 = vmax.f32 %v426, 0.0
    %v595 = vmax.f32 %v428, 0.0
    %v596 = vmax.f32 %v430, 0.0
    %v597 = vmax.f32 %v432, 0.0
    %v598 = vmax.f32 %v436, 0.0
    %v599 = vmax.f32 %v438, 0.0
    %v600 = vmax.f32 %v440, 0.0
    %v601 = vmax.f32 %v442, 0.0
    %v602 = vmax.f32 %v446, 0.0
    %v603 = vmax.f32 %v448, 0.0
    %v604 = vmax.f32 %v450, 0.0
    %v605 = vmax.f32 %v452, 0.0
    %v606 = vmax.f32 %v456, 0.0
    %v607 = vmax.f32 %v458, 0.0
    %v608 = vmax.f32 %v460, 0.0
    %v609 = vmax.f32 %v462, 0.0
    %v610 = vmax.f32 %v466, 0.0
    %v611 = vmax.f32 %v468, 0.0
    %v612 = vmax.f32 %v470, 0.0
    %v613 = vmax.f32 %v472, 0.0
    %v614 = vmax.f32 %v476, 0.0
    %v615 = vmax.f32 %v478, 0.0
    %v616 = vmax.f32 %v480, 0.0
    %v617 = vmax.f32 %v482, 0.0
    %v618 = vmax.f32 %v486, 0.0
    %v619 = vmax.f32 %v488, 0.0
    %v620 = vmax.f32 %v490, 0.0
    %v621 = vmax.f32 %v492, 0.0
    %v622 = vmax.f32 %v496, 0.0
    %v623 = vmax.f32 %v498, 0.0
    %v624 = vmax.f32 %v500, 0.0
    %v625 = vmax.f32 %v502, 0.0
    %v626 = vmax.f32 %v506, 0.0
    %v627 = vmax.f32 %v508, 0.0
    %v628 = vmax.f32 %v510, 0.0
    %v629 = vmax.f32 %v512, 0.0
    %v630 = vmax.f32 %v516, 0.0
    %v631 = vmax.f32 %v518, 0.0
    %v632 = vmax.f32 %v520, 0.0
    %v633 = vmax.f32 %v522, 0.0
    %v634 = vmax.f32 %v526, 0.0
    %v635 = vmax.f32 %v528, 0.0
    %v636 = vmax.f32 %v530, 0.0
    %v637 = vmax.f32 %v532, 0.0
    %v638 = vmax.f32 %v536, 0.0
    %v639 = vmax.f32 %v538, 0.0
    %v640 = vmax.f32 %v540, 0.0
    %v641 = vmax.f32 %v542, 0.0
    %v642 = vmax.f32 %v546, 0.0
    %v643 = vmax.f32 %v548, 0.0
    %v644 = vmax.f32 %v550, 0.0
    %v645 = vmax.f32 %v552, 0.0
    %v646 = vmax.f32 %v556, 0.0
    %v647 = vmax.f32 %v558, 0.0
    %v648 = vmax.f32 %v560, 0.0
    %v649 = vmax.f32 %v562, 0.0
    %v650 = vmax.f32 %v566, 0.0
    %v651 = vmax.f32 %v568, 0.0
    %v652 = vmax.f32 %v570, 0.0
    %v653 = vmax.f32 %v572, 0.0
    %v654 = vmax.f32 %v576, 0.0
    %v655 = vmax.f32 %v578, 0.0
    %v656 = vmax.f32 %v580, 0.0
    %v657 = vmax.f32 %v582, 0.0
    %v658 = vmax.f32 %v586, 0.0
    %v659 = vmax.f32 %v588, 0.0
    %v660 = vmax.f32 %v590, 0.0
    %v661 = vmax.f32 %v592, 0.0
    %v662 = vpack.c.bf16 %v596, %v594
    %v663 = vpack.c.bf16 %v597, %v595
    %v664 = vpack.c.bf16 %v600, %v598
    %v665 = vpack.c.bf16 %v601, %v599
    %v666 = vpack.c.bf16 %v604, %v602
    %v667 = vpack.c.bf16 %v605, %v603
    %v668 = vpack.c.bf16 %v608, %v606
    %v669 = vpack.c.bf16 %v609, %v607
    %v670 = vpack.c.bf16 %v612, %v610
    %v671 = vpack.c.bf16 %v613, %v611
    %v672 = vpack.c.bf16 %v616, %v614
    %v673 = vpack.c.bf16 %v617, %v615
    %v674 = vpack.c.bf16 %v620, %v618
    %v675 = vpack.c.bf16 %v621, %v619
    %v676 = vpack.c.bf16 %v624, %v622
    %v677 = vpack.c.bf16 %v625, %v623
    %v678 = vpack.c.bf16 %v628, %v626
    %v679 = vpack.c.bf16 %v629, %v627
    %v680 = vpack.c.bf16 %v632, %v630
    %v681 = vpack.c.bf16 %v633, %v631
    %v682 = vpack.c.bf16 %v636, %v634
    %v683 = vpack.c.bf16 %v637, %v635
    %v684 = vpack.c.bf16 %v640, %v638
    %v685 = vpack.c.bf16 %v641, %v639
    %v686 = vpack.c.bf16 %v644, %v642
    %v687 = vpack.c.bf16 %v645, %v643
    %v688 = vpack.c.bf16 %v648, %v646
    %v689 = vpack.c.bf16 %v649, %v647
    %v690 = vpack.c.bf16 %v652, %v650
    %v691 = vpack.c.bf16 %v653, %v651
    %v692 = vpack.c.bf16 %v656, %v654
    %v693 = vpack.c.bf16 %v657, %v655
    %v694 = vpack.c.bf16 %v660, %v658
    %v695 = vpack.c.bf16 %v661, %v659
    %v696 = vld [vmem:[#allocation8] sm:$0xff]
    %v697 = vld [vmem:[#allocation8 + $0x8] sm:$0xff]
    %v698 = vld [vmem:[#allocation8 + $0x10] sm:$0xff]
    %v699 = vld [vmem:[#allocation8 + $0x18] sm:$0xff]
    %v700 = vld [vmem:[#allocation8 + $0x20] sm:$0xff]
    %v701 = vld [vmem:[#allocation8 + $0x28] sm:$0xff]
    %v702 = vld [vmem:[#allocation8 + $0x30] sm:$0xff]
    %v703 = vld [vmem:[#allocation8 + $0x38] sm:$0xff]
    %v704 = vld [vmem:[#allocation8 + $0x40] sm:$0xff]
    %v705 = vld [vmem:[#allocation8 + $0x48] sm:$0xff]
    %v706 = vld [vmem:[#allocation8 + $0x50] sm:$0xff]
    %v707 = vld [vmem:[#allocation8 + $0x58] sm:$0xff]
    %v708 = vld [vmem:[#allocation8 + $0x60] sm:$0xff]
    %v709 = vld [vmem:[#allocation8 + $0x68] sm:$0xff]
    %v710 = vld [vmem:[#allocation8 + $0x70] sm:$0xff]
    %v711 = vld [vmem:[#allocation8 + $0x78] sm:$0xff]
    %v712 = vld [vmem:[#allocation8 + $0x80] sm:$0xff]
    %v713 = vld [vmem:[#allocation8 + $0x88] sm:$0xff]
    %v714 = vld [vmem:[#allocation8 + $0x90] sm:$0xff]
    %v715 = vld [vmem:[#allocation8 + $0x98] sm:$0xff]
    %v716 = vld [vmem:[#allocation8 + $0xa0] sm:$0xff]
    %v717 = vld [vmem:[#allocation8 + $0xa8] sm:$0xff]
    %v718 = vld [vmem:[#allocation8 + $0xb0] sm:$0xff]
    %v719 = vld [vmem:[#allocation8 + $0xb8] sm:$0xff]
    %v720 = vld [vmem:[#allocation8 + $0xc0] sm:$0xff]
    %v721 = vld [vmem:[#allocation8 + $0xc8] sm:$0xff]
    %v722 = vld [vmem:[#allocation8 + $0xd0] sm:$0xff]
    %v723 = vld [vmem:[#allocation8 + $0xd8] sm:$0xff]
    %v724 = vld [vmem:[#allocation8 + $0xe0] sm:$0xff]
    %v725 = vld [vmem:[#allocation8 + $0xe8] sm:$0xff]
    %v726 = vld [vmem:[#allocation8 + $0xf0] sm:$0xff]
    %v727 = vld [vmem:[#allocation8 + $0xf8] sm:$0xff]
    %v728 = vld [vmem:[#allocation10] sm:$0x3]
    %v730 = vlaneseq
    %v731 = vshrl.u32 %v730, 7
    %v732 = vsub.s32 0, %v731
    %v733 = vrot.slane %v728, %v732
    %v734 = vlaneseq
    %v735 = vshrl.u32 %v734, 7
    %v736 = vsub.s32 1, %v735
    %v737 = vrot.slane %v728, %v736
    %v772 = vunpack.c.l.b16 %v696
    %v773 = vunpack.c.h.b16 %v696
    %v774 = vunpack.c.l.b16 %v697
    %v775 = vunpack.c.h.b16 %v697
    %v776 = vunpack.c.l.b16 %v698
    %v777 = vunpack.c.h.b16 %v698
    %v778 = vunpack.c.l.b16 %v699
    %v779 = vunpack.c.h.b16 %v699
    %v780 = vunpack.c.l.b16 %v700
    %v781 = vunpack.c.h.b16 %v700
    %v782 = vunpack.c.l.b16 %v701
    %v783 = vunpack.c.h.b16 %v701
    %v784 = vunpack.c.l.b16 %v702
    %v785 = vunpack.c.h.b16 %v702
    %v786 = vunpack.c.l.b16 %v703
    %v787 = vunpack.c.h.b16 %v703
    %v788 = vunpack.c.l.b16 %v704
    %v789 = vunpack.c.h.b16 %v704
    %v790 = vunpack.c.l.b16 %v705
    %v791 = vunpack.c.h.b16 %v705
    %v792 = vunpack.c.l.b16 %v706
    %v793 = vunpack.c.h.b16 %v706
    %v794 = vunpack.c.l.b16 %v707
    %v795 = vunpack.c.h.b16 %v707
    %v796 = vunpack.c.l.b16 %v708
    %v797 = vunpack.c.h.b16 %v708
    %v798 = vunpack.c.l.b16 %v709
    %v799 = vunpack.c.h.b16 %v709
    %v800 = vunpack.c.l.b16 %v710
    %v801 = vunpack.c.h.b16 %v710
    %v802 = vunpack.c.l.b16 %v711
    %v803 = vunpack.c.h.b16 %v711
    %v804 = vunpack.c.l.b16 %v712
    %v805 = vunpack.c.h.b16 %v712
    %v806 = vunpack.c.l.b16 %v713
    %v807 = vunpack.c.h.b16 %v713
    %v808 = vunpack.c.l.b16 %v714
    %v809 = vunpack.c.h.b16 %v714
    %v810 = vunpack.c.l.b16 %v715
    %v811 = vunpack.c.h.b16 %v715
    %v812 = vunpack.c.l.b16 %v716
    %v813 = vunpack.c.h.b16 %v716
    %v814 = vunpack.c.l.b16 %v717
    %v815 = vunpack.c.h.b16 %v717
    %v816 = vunpack.c.l.b16 %v718
    %v817 = vunpack.c.h.b16 %v718
    %v818 = vunpack.c.l.b16 %v719
    %v819 = vunpack.c.h.b16 %v719
    %v820 = vunpack.c.l.b16 %v720
    %v821 = vunpack.c.h.b16 %v720
    %v822 = vunpack.c.l.b16 %v721
    %v823 = vunpack.c.h.b16 %v721
    %v824 = vunpack.c.l.b16 %v722
    %v825 = vunpack.c.h.b16 %v722
    %v826 = vunpack.c.l.b16 %v723
    %v827 = vunpack.c.h.b16 %v723
    %v828 = vunpack.c.l.b16 %v724
    %v829 = vunpack.c.h.b16 %v724
    %v830 = vunpack.c.l.b16 %v725
    %v831 = vunpack.c.h.b16 %v725
    %v832 = vunpack.c.l.b16 %v726
    %v833 = vunpack.c.h.b16 %v726
    %v834 = vunpack.c.l.b16 %v727
    %v835 = vunpack.c.h.b16 %v727
    %v836 = vpack.c.b16 %v774, %v772
    %v837 = vpack.c.b16 %v775, %v773
    %v838 = vpack.c.b16 %v778, %v776
    %v839 = vpack.c.b16 %v779, %v777
    %v840 = vpack.c.b16 %v782, %v780
    %v841 = vpack.c.b16 %v783, %v781
    %v842 = vpack.c.b16 %v786, %v784
    %v843 = vpack.c.b16 %v787, %v785
    %v844 = vpack.c.b16 %v790, %v788
    %v845 = vpack.c.b16 %v791, %v789
    %v846 = vpack.c.b16 %v794, %v792
    %v847 = vpack.c.b16 %v795, %v793
    %v848 = vpack.c.b16 %v798, %v796
    %v849 = vpack.c.b16 %v799, %v797
    %v850 = vpack.c.b16 %v802, %v800
    %v851 = vpack.c.b16 %v803, %v801
    %v852 = vpack.c.b16 %v806, %v804
    %v853 = vpack.c.b16 %v807, %v805
    %v854 = vpack.c.b16 %v810, %v808
    %v855 = vpack.c.b16 %v811, %v809
    %v856 = vpack.c.b16 %v814, %v812
    %v857 = vpack.c.b16 %v815, %v813
    %v858 = vpack.c.b16 %v818, %v816
    %v859 = vpack.c.b16 %v819, %v817
    %v860 = vpack.c.b16 %v822, %v820
    %v861 = vpack.c.b16 %v823, %v821
    %v862 = vpack.c.b16 %v826, %v824
    %v863 = vpack.c.b16 %v827, %v825
    %v864 = vpack.c.b16 %v830, %v828
    %v865 = vpack.c.b16 %v831, %v829
    %v866 = vpack.c.b16 %v834, %v832
    %v867 = vpack.c.b16 %v835, %v833
    %900 = vmatprep.subr.bf16.mxu0 %v837
    %901 = vmatpush1.bf16.msra.mxu0 %v836
    %902 = vmatprep.subr.bf16.mxu0 %v839
    %903 = vmatpush1.bf16.msra.mxu0 %v838
    %904 = vmatprep.subr.bf16.mxu0 %v841
    %905 = vmatpush1.bf16.msra.mxu0 %v840
    %906 = vmatprep.subr.bf16.mxu0 %v843
    %907 = vmatpush1.bf16.msra.mxu0 %v842
    %908 = vmatprep.subr.bf16.mxu0 %v845
    %909 = vmatpush1.bf16.msra.mxu0 %v844
    %910 = vmatprep.subr.bf16.mxu0 %v847
    %911 = vmatpush1.bf16.msra.mxu0 %v846
    %912 = vmatprep.subr.bf16.mxu0 %v849
    %913 = vmatpush1.bf16.msra.mxu0 %v848
    %914 = vmatprep.subr.bf16.mxu0 %v851
    %915 = vmatpush1.bf16.msra.mxu0 %v850
    %916 = vmatprep.subr.bf16.mxu0 %v853
    %917 = vmatpush1.bf16.msra.mxu0 %v852
    %918 = vmatprep.subr.bf16.mxu0 %v855
    %919 = vmatpush1.bf16.msra.mxu0 %v854
    %920 = vmatprep.subr.bf16.mxu0 %v857
    %921 = vmatpush1.bf16.msra.mxu0 %v856
    %922 = vmatprep.subr.bf16.mxu0 %v859
    %923 = vmatpush1.bf16.msra.mxu0 %v858
    %924 = vmatprep.subr.bf16.mxu0 %v861
    %925 = vmatpush1.bf16.msra.mxu0 %v860
    %926 = vmatprep.subr.bf16.mxu0 %v863
    %927 = vmatpush1.bf16.msra.mxu0 %v862
    %928 = vmatprep.subr.bf16.mxu0 %v865
    %929 = vmatpush1.bf16.msra.mxu0 %v864
    %930 = vmatprep.subr.bf16.mxu0 %v867
    %931 = vmatpush1.bf16.msra.mxu0 %v866
    %932 = vmatprep.mubr.bf16.mxu0 %v663
    %933 = vmatmul.mubr.bf16.gmra.mrb[0].mxu0 %v662
    %v934 = vpop.f32.mrb[0].mxu0
    %v935 = vadd.f32 %v733, %v934
    %v936 = vpop.f32.mrb[0].mxu0
    %v937 = vadd.f32 %v737, %v936
    %v938 = vpop.f32.mrb[0].mxu0
    %v939 = vadd.f32 %v733, %v938
    %v940 = vpop.f32.mrb[0].mxu0
    %v941 = vadd.f32 %v737, %v940
    %942 = vmatprep.mubr.bf16.mxu0 %v665
    %943 = vmatmul.mubr.bf16.gmra.mrb[0].mxu0 %v664
    %v944 = vpop.f32.mrb[0].mxu0
    %v945 = vadd.f32 %v733, %v944
    %v946 = vpop.f32.mrb[0].mxu0
    %v947 = vadd.f32 %v737, %v946
    %v948 = vpop.f32.mrb[0].mxu0
    %v949 = vadd.f32 %v733, %v948
    %v950 = vpop.f32.mrb[0].mxu0
    %v951 = vadd.f32 %v737, %v950
    %952 = vmatprep.mubr.bf16.mxu0 %v667
    %953 = vmatmul.mubr.bf16.gmra.mrb[0].mxu0 %v666
    %v954 = vpop.f32.mrb[0].mxu0
    %v955 = vadd.f32 %v733, %v954
    %v956 = vpop.f32.mrb[0].mxu0
    %v957 = vadd.f32 %v737, %v956
    %v958 = vpop.f32.mrb[0].mxu0
    %v959 = vadd.f32 %v733, %v958
    %v960 = vpop.f32.mrb[0].mxu0
    %v961 = vadd.f32 %v737, %v960
    %962 = vmatprep.mubr.bf16.mxu0 %v669
    %963 = vmatmul.mubr.bf16.gmra.mrb[0].mxu0 %v668
    %v964 = vpop.f32.mrb[0].mxu0
    %v965 = vadd.f32 %v733, %v964
    %v966 = vpop.f32.mrb[0].mxu0
    %v967 = vadd.f32 %v737, %v966
    %v968 = vpop.f32.mrb[0].mxu0
    %v969 = vadd.f32 %v733, %v968
    %v970 = vpop.f32.mrb[0].mxu0
    %v971 = vadd.f32 %v737, %v970
    %972 = vmatprep.mubr.bf16.mxu0 %v671
    %973 = vmatmul.mubr.bf16.gmra.mrb[0].mxu0 %v670
    %v974 = vpop.f32.mrb[0].mxu0
    %v975 = vadd.f32 %v733, %v974
    %v976 = vpop.f32.mrb[0].mxu0
    %v977 = vadd.f32 %v737, %v976
    %v978 = vpop.f32.mrb[0].mxu0
    %v979 = vadd.f32 %v733, %v978
    %v980 = vpop.f32.mrb[0].mxu0
    %v981 = vadd.f32 %v737, %v980
    %982 = vmatprep.mubr.bf16.mxu0 %v673
    %983 = vmatmul.mubr.bf16.gmra.mrb[0].mxu0 %v672
    %v984 = vpop.f32.mrb[0].mxu0
    %v985 = vadd.f32 %v733, %v984
    %v986 = vpop.f32.mrb[0].mxu0
    %v987 = vadd.f32 %v737, %v986
    %v988 = vpop.f32.mrb[0].mxu0
    %v989 = vadd.f32 %v733, %v988
    %v990 = vpop.f32.mrb[0].mxu0
    %v991 = vadd.f32 %v737, %v990
    %992 = vmatprep.mubr.bf16.mxu0 %v675
    %993 = vmatmul.mubr.bf16.gmra.mrb[0].mxu0 %v674
    %v994 = vpop.f32.mrb[0].mxu0
    %v995 = vadd.f32 %v733, %v994
    %v996 = vpop.f32.mrb[0].mxu0
    %v997 = vadd.f32 %v737, %v996
    %v998 = vpop.f32.mrb[0].mxu0
    %v999 = vadd.f32 %v733, %v998
    %v1000 = vpop.f32.mrb[0].mxu0
    %v1001 = vadd.f32 %v737, %v1000
    %1002 = vmatprep.mubr.bf16.mxu0 %v677
    %1003 = vmatmul.mubr.bf16.gmra.mrb[0].mxu0 %v676
    %v1004 = vpop.f32.mrb[0].mxu0
    %v1005 = vadd.f32 %v733, %v1004
    %v1006 = vpop.f32.mrb[0].mxu0
    %v1007 = vadd.f32 %v737, %v1006
    %v1008 = vpop.f32.mrb[0].mxu0
    %v1009 = vadd.f32 %v733, %v1008
    %v1010 = vpop.f32.mrb[0].mxu0
    %v1011 = vadd.f32 %v737, %v1010
    %1012 = vmatprep.mubr.bf16.mxu0 %v679
    %1013 = vmatmul.mubr.bf16.gmra.mrb[0].mxu0 %v678
    %v1014 = vpop.f32.mrb[0].mxu0
    %v1015 = vadd.f32 %v733, %v1014
    %v1016 = vpop.f32.mrb[0].mxu0
    %v1017 = vadd.f32 %v737, %v1016
    %v1018 = vpop.f32.mrb[0].mxu0
    %v1019 = vadd.f32 %v733, %v1018
    %v1020 = vpop.f32.mrb[0].mxu0
    %v1021 = vadd.f32 %v737, %v1020
    %1022 = vmatprep.mubr.bf16.mxu0 %v681
    %1023 = vmatmul.mubr.bf16.gmra.mrb[0].mxu0 %v680
    %v1024 = vpop.f32.mrb[0].mxu0
    %v1025 = vadd.f32 %v733, %v1024
    %v1026 = vpop.f32.mrb[0].mxu0
    %v1027 = vadd.f32 %v737, %v1026
    %v1028 = vpop.f32.mrb[0].mxu0
    %v1029 = vadd.f32 %v733, %v1028
    %v1030 = vpop.f32.mrb[0].mxu0
    %v1031 = vadd.f32 %v737, %v1030
    %1032 = vmatprep.mubr.bf16.mxu0 %v683
    %1033 = vmatmul.mubr.bf16.gmra.mrb[0].mxu0 %v682
    %v1034 = vpop.f32.mrb[0].mxu0
    %v1035 = vadd.f32 %v733, %v1034
    %v1036 = vpop.f32.mrb[0].mxu0
    %v1037 = vadd.f32 %v737, %v1036
    %v1038 = vpop.f32.mrb[0].mxu0
    %v1039 = vadd.f32 %v733, %v1038
    %v1040 = vpop.f32.mrb[0].mxu0
    %v1041 = vadd.f32 %v737, %v1040
    %1042 = vmatprep.mubr.bf16.mxu0 %v685
    %1043 = vmatmul.mubr.bf16.gmra.mrb[0].mxu0 %v684
    %v1044 = vpop.f32.mrb[0].mxu0
    %v1045 = vadd.f32 %v733, %v1044
    %v1046 = vpop.f32.mrb[0].mxu0
    %v1047 = vadd.f32 %v737, %v1046
    %v1048 = vpop.f32.mrb[0].mxu0
    %v1049 = vadd.f32 %v733, %v1048
    %v1050 = vpop.f32.mrb[0].mxu0
    %v1051 = vadd.f32 %v737, %v1050
    %1052 = vmatprep.mubr.bf16.mxu0 %v687
    %1053 = vmatmul.mubr.bf16.gmra.mrb[0].mxu0 %v686
    %v1054 = vpop.f32.mrb[0].mxu0
    %v1055 = vadd.f32 %v733, %v1054
    %v1056 = vpop.f32.mrb[0].mxu0
    %v1057 = vadd.f32 %v737, %v1056
    %v1058 = vpop.f32.mrb[0].mxu0
    %v1059 = vadd.f32 %v733, %v1058
    %v1060 = vpop.f32.mrb[0].mxu0
    %v1061 = vadd.f32 %v737, %v1060
    %1062 = vmatprep.mubr.bf16.mxu0 %v689
    %1063 = vmatmul.mubr.bf16.gmra.mrb[0].mxu0 %v688
    %v1064 = vpop.f32.mrb[0].mxu0
    %v1065 = vadd.f32 %v733, %v1064
    %v1066 = vpop.f32.mrb[0].mxu0
    %v1067 = vadd.f32 %v737, %v1066
    %v1068 = vpop.f32.mrb[0].mxu0
    %v1069 = vadd.f32 %v733, %v1068
    %v1070 = vpop.f32.mrb[0].mxu0
    %v1071 = vadd.f32 %v737, %v1070
    %1072 = vmatprep.mubr.bf16.mxu0 %v691
    %1073 = vmatmul.mubr.bf16.gmra.mrb[0].mxu0 %v690
    %v1074 = vpop.f32.mrb[0].mxu0
    %v1075 = vadd.f32 %v733, %v1074
    %v1076 = vpop.f32.mrb[0].mxu0
    %v1077 = vadd.f32 %v737, %v1076
    %v1078 = vpop.f32.mrb[0].mxu0
    %v1079 = vadd.f32 %v733, %v1078
    %v1080 = vpop.f32.mrb[0].mxu0
    %v1081 = vadd.f32 %v737, %v1080
    %1082 = vmatprep.mubr.bf16.mxu0 %v693
    %1083 = vmatmul.mubr.bf16.gmra.mrb[0].mxu0 %v692
    %v1084 = vpop.f32.mrb[0].mxu0
    %v1085 = vadd.f32 %v733, %v1084
    %v1086 = vpop.f32.mrb[0].mxu0
    %v1087 = vadd.f32 %v737, %v1086
    %v1088 = vpop.f32.mrb[0].mxu0
    %v1089 = vadd.f32 %v733, %v1088
    %v1090 = vpop.f32.mrb[0].mxu0
    %v1091 = vadd.f32 %v737, %v1090
    %1092 = vmatprep.mubr.bf16.mxu0 %v695
    %1093 = vmatmul.mubr.bf16.gmra.mrb[0].mxu0 %v694
    %v1094 = vpop.f32.mrb[0].mxu0
    %v1095 = vadd.f32 %v733, %v1094
    %v1096 = vpop.f32.mrb[0].mxu0
    %v1097 = vadd.f32 %v737, %v1096
    %v1098 = vpop.f32.mrb[0].mxu0
    %v1099 = vadd.f32 %v733, %v1098
    %v1100 = vpop.f32.mrb[0].mxu0
    %v1101 = vadd.f32 %v737, %v1100
    %1102 = vdwg.mxu0
    %v1103 = vadd.f32 %v85, %v935
    %v1104 = vadd.f32 %v86, %v937
    %v1105 = vadd.f32 %v87, %v939
    %v1106 = vadd.f32 %v88, %v941
    %v1107 = vadd.f32 %v89, %v945
    %v1108 = vadd.f32 %v90, %v947
    %v1109 = vadd.f32 %v91, %v949
    %v1110 = vadd.f32 %v92, %v951
    %v1111 = vadd.f32 %v93, %v955
    %v1112 = vadd.f32 %v94, %v957
    %v1113 = vadd.f32 %v95, %v959
    %v1114 = vadd.f32 %v96, %v961
    %v1115 = vadd.f32 %v97, %v965
    %v1116 = vadd.f32 %v98, %v967
    %v1117 = vadd.f32 %v99, %v969
    %v1118 = vadd.f32 %v100, %v971
    %v1119 = vadd.f32 %v101, %v975
    %v1120 = vadd.f32 %v102, %v977
    %v1121 = vadd.f32 %v103, %v979
    %v1122 = vadd.f32 %v104, %v981
    %v1123 = vadd.f32 %v105, %v985
    %v1124 = vadd.f32 %v106, %v987
    %v1125 = vadd.f32 %v107, %v989
    %v1126 = vadd.f32 %v108, %v991
    %v1127 = vadd.f32 %v109, %v995
    %v1128 = vadd.f32 %v110, %v997
    %v1129 = vadd.f32 %v111, %v999
    %v1130 = vadd.f32 %v112, %v1001
    %v1131 = vadd.f32 %v113, %v1005
    %v1132 = vadd.f32 %v114, %v1007
    %v1133 = vadd.f32 %v115, %v1009
    %v1134 = vadd.f32 %v116, %v1011
    %v1135 = vadd.f32 %v117, %v1015
    %v1136 = vadd.f32 %v118, %v1017
    %v1137 = vadd.f32 %v119, %v1019
    %v1138 = vadd.f32 %v120, %v1021
    %v1139 = vadd.f32 %v121, %v1025
    %v1140 = vadd.f32 %v122, %v1027
    %v1141 = vadd.f32 %v123, %v1029
    %v1142 = vadd.f32 %v124, %v1031
    %v1143 = vadd.f32 %v125, %v1035
    %v1144 = vadd.f32 %v126, %v1037
    %v1145 = vadd.f32 %v127, %v1039
    %v1146 = vadd.f32 %v128, %v1041
    %v1147 = vadd.f32 %v129, %v1045
    %v1148 = vadd.f32 %v130, %v1047
    %v1149 = vadd.f32 %v131, %v1049
    %v1150 = vadd.f32 %v132, %v1051
    %v1151 = vadd.f32 %v133, %v1055
    %v1152 = vadd.f32 %v134, %v1057
    %v1153 = vadd.f32 %v135, %v1059
    %v1154 = vadd.f32 %v136, %v1061
    %v1155 = vadd.f32 %v137, %v1065
    %v1156 = vadd.f32 %v138, %v1067
    %v1157 = vadd.f32 %v139, %v1069
    %v1158 = vadd.f32 %v140, %v1071
    %v1159 = vadd.f32 %v141, %v1075
    %v1160 = vadd.f32 %v142, %v1077
    %v1161 = vadd.f32 %v143, %v1079
    %v1162 = vadd.f32 %v144, %v1081
    %v1163 = vadd.f32 %v145, %v1085
    %v1164 = vadd.f32 %v146, %v1087
    %v1165 = vadd.f32 %v147, %v1089
    %v1166 = vadd.f32 %v148, %v1091
    %v1167 = vadd.f32 %v149, %v1095
    %v1168 = vadd.f32 %v150, %v1097
    %v1169 = vadd.f32 %v151, %v1099
    %v1170 = vadd.f32 %v152, %v1101
    %v1171 = vmax.f32 %v1103, 0.0
    %v1172 = vmax.f32 %v1104, 0.0
    %v1173 = vmax.f32 %v1105, 0.0
    %v1174 = vmax.f32 %v1106, 0.0
    %v1175 = vmax.f32 %v1107, 0.0
    %v1176 = vmax.f32 %v1108, 0.0
    %v1177 = vmax.f32 %v1109, 0.0
    %v1178 = vmax.f32 %v1110, 0.0
    %v1179 = vmax.f32 %v1111, 0.0
    %v1180 = vmax.f32 %v1112, 0.0
    %v1181 = vmax.f32 %v1113, 0.0
    %v1182 = vmax.f32 %v1114, 0.0
    %v1183 = vmax.f32 %v1115, 0.0
    %v1184 = vmax.f32 %v1116, 0.0
    %v1185 = vmax.f32 %v1117, 0.0
    %v1186 = vmax.f32 %v1118, 0.0
    %v1187 = vmax.f32 %v1119, 0.0
    %v1188 = vmax.f32 %v1120, 0.0
    %v1189 = vmax.f32 %v1121, 0.0
    %v1190 = vmax.f32 %v1122, 0.0
    %v1191 = vmax.f32 %v1123, 0.0
    %v1192 = vmax.f32 %v1124, 0.0
    %v1193 = vmax.f32 %v1125, 0.0
    %v1194 = vmax.f32 %v1126, 0.0
    %v1195 = vmax.f32 %v1127, 0.0
    %v1196 = vmax.f32 %v1128, 0.0
    %v1197 = vmax.f32 %v1129, 0.0
    %v1198 = vmax.f32 %v1130, 0.0
    %v1199 = vmax.f32 %v1131, 0.0
    %v1200 = vmax.f32 %v1132, 0.0
    %v1201 = vmax.f32 %v1133, 0.0
    %v1202 = vmax.f32 %v1134, 0.0
    %v1203 = vmax.f32 %v1135, 0.0
    %v1204 = vmax.f32 %v1136, 0.0
    %v1205 = vmax.f32 %v1137, 0.0
    %v1206 = vmax.f32 %v1138, 0.0
    %v1207 = vmax.f32 %v1139, 0.0
    %v1208 = vmax.f32 %v1140, 0.0
    %v1209 = vmax.f32 %v1141, 0.0
    %v1210 = vmax.f32 %v1142, 0.0
    %v1211 = vmax.f32 %v1143, 0.0
    %v1212 = vmax.f32 %v1144, 0.0
    %v1213 = vmax.f32 %v1145, 0.0
    %v1214 = vmax.f32 %v1146, 0.0
    %v1215 = vmax.f32 %v1147, 0.0
    %v1216 = vmax.f32 %v1148, 0.0
    %v1217 = vmax.f32 %v1149, 0.0
    %v1218 = vmax.f32 %v1150, 0.0
    %v1219 = vmax.f32 %v1151, 0.0
    %v1220 = vmax.f32 %v1152, 0.0
    %v1221 = vmax.f32 %v1153, 0.0
    %v1222 = vmax.f32 %v1154, 0.0
    %v1223 = vmax.f32 %v1155, 0.0
    %v1224 = vmax.f32 %v1156, 0.0
    %v1225 = vmax.f32 %v1157, 0.0
    %v1226 = vmax.f32 %v1158, 0.0
    %v1227 = vmax.f32 %v1159, 0.0
    %v1228 = vmax.f32 %v1160, 0.0
    %v1229 = vmax.f32 %v1161, 0.0
    %v1230 = vmax.f32 %v1162, 0.0
    %v1231 = vmax.f32 %v1163, 0.0
    %v1232 = vmax.f32 %v1164, 0.0
    %v1233 = vmax.f32 %v1165, 0.0
    %v1234 = vmax.f32 %v1166, 0.0
    %v1235 = vmax.f32 %v1167, 0.0
    %v1236 = vmax.f32 %v1168, 0.0
    %v1237 = vmax.f32 %v1169, 0.0
    %v1238 = vmax.f32 %v1170, 0.0
    %1239 = vst [vmem:[#allocation11] sm:$0xff] %v1171
    %1240 = vst [vmem:[#allocation11 + $0x8] sm:$0xff] %v1172
    %1241 = vst [vmem:[#allocation11 + $0x10] sm:$0xff] %v1173
    %1242 = vst [vmem:[#allocation11 + $0x18] sm:$0xff] %v1174
    %1243 = vst [vmem:[#allocation11 + $0x20] sm:$0xff] %v1175
    %1244 = vst [vmem:[#allocation11 + $0x28] sm:$0xff] %v1176
    %1245 = vst [vmem:[#allocation11 + $0x30] sm:$0xff] %v1177
    %1246 = vst [vmem:[#allocation11 + $0x38] sm:$0xff] %v1178
    %1247 = vst [vmem:[#allocation11 + $0x40] sm:$0xff] %v1179
    %1248 = vst [vmem:[#allocation11 + $0x48] sm:$0xff] %v1180
    %1249 = vst [vmem:[#allocation11 + $0x50] sm:$0xff] %v1181
    %1250 = vst [vmem:[#allocation11 + $0x58] sm:$0xff] %v1182
    %1251 = vst [vmem:[#allocation11 + $0x60] sm:$0xff] %v1183
    %1252 = vst [vmem:[#allocation11 + $0x68] sm:$0xff] %v1184
    %1253 = vst [vmem:[#allocation11 + $0x70] sm:$0xff] %v1185
    %1254 = vst [vmem:[#allocation11 + $0x78] sm:$0xff] %v1186
    %1255 = vst [vmem:[#allocation11 + $0x80] sm:$0xff] %v1187
    %1256 = vst [vmem:[#allocation11 + $0x88] sm:$0xff] %v1188
    %1257 = vst [vmem:[#allocation11 + $0x90] sm:$0xff] %v1189
    %1258 = vst [vmem:[#allocation11 + $0x98] sm:$0xff] %v1190
    %1259 = vst [vmem:[#allocation11 + $0xa0] sm:$0xff] %v1191
    %1260 = vst [vmem:[#allocation11 + $0xa8] sm:$0xff] %v1192
    %1261 = vst [vmem:[#allocation11 + $0xb0] sm:$0xff] %v1193
    %1262 = vst [vmem:[#allocation11 + $0xb8] sm:$0xff] %v1194
    %1263 = vst [vmem:[#allocation11 + $0xc0] sm:$0xff] %v1195
    %1264 = vst [vmem:[#allocation11 + $0xc8] sm:$0xff] %v1196
    %1265 = vst [vmem:[#allocation11 + $0xd0] sm:$0xff] %v1197
    %1266 = vst [vmem:[#allocation11 + $0xd8] sm:$0xff] %v1198
    %1267 = vst [vmem:[#allocation11 + $0xe0] sm:$0xff] %v1199
    %1268 = vst [vmem:[#allocation11 + $0xe8] sm:$0xff] %v1200
    %1269 = vst [vmem:[#allocation11 + $0xf0] sm:$0xff] %v1201
    %1270 = vst [vmem:[#allocation11 + $0xf8] sm:$0xff] %v1202
    %1271 = vst [vmem:[#allocation11 + $0x100] sm:$0xff] %v1203
    %1272 = vst [vmem:[#allocation11 + $0x108] sm:$0xff] %v1204
    %1273 = vst [vmem:[#allocation11 + $0x110] sm:$0xff] %v1205
    %1274 = vst [vmem:[#allocation11 + $0x118] sm:$0xff] %v1206
    %1275 = vst [vmem:[#allocation11 + $0x120] sm:$0xff] %v1207
    %1276 = vst [vmem:[#allocation11 + $0x128] sm:$0xff] %v1208
    %1277 = vst [vmem:[#allocation11 + $0x130] sm:$0xff] %v1209
    %1278 = vst [vmem:[#allocation11 + $0x138] sm:$0xff] %v1210
    %1279 = vst [vmem:[#allocation11 + $0x140] sm:$0xff] %v1211
    %1280 = vst [vmem:[#allocation11 + $0x148] sm:$0xff] %v1212
    %1281 = vst [vmem:[#allocation11 + $0x150] sm:$0xff] %v1213
    %1282 = vst [vmem:[#allocation11 + $0x158] sm:$0xff] %v1214
    %1283 = vst [vmem:[#allocation11 + $0x160] sm:$0xff] %v1215
    %1284 = vst [vmem:[#allocation11 + $0x168] sm:$0xff] %v1216
    %1285 = vst [vmem:[#allocation11 + $0x170] sm:$0xff] %v1217
    %1286 = vst [vmem:[#allocation11 + $0x178] sm:$0xff] %v1218
    %1287 = vst [vmem:[#allocation11 + $0x180] sm:$0xff] %v1219
    %1288 = vst [vmem:[#allocation11 + $0x188] sm:$0xff] %v1220
    %1289 = vst [vmem:[#allocation11 + $0x190] sm:$0xff] %v1221
    %1290 = vst [vmem:[#allocation11 + $0x198] sm:$0xff] %v1222
    %1291 = vst [vmem:[#allocation11 + $0x1a0] sm:$0xff] %v1223
    %1292 = vst [vmem:[#allocation11 + $0x1a8] sm:$0xff] %v1224
    %1293 = vst [vmem:[#allocation11 + $0x1b0] sm:$0xff] %v1225
    %1294 = vst [vmem:[#allocation11 + $0x1b8] sm:$0xff] %v1226
    %1295 = vst [vmem:[#allocation11 + $0x1c0] sm:$0xff] %v1227
    %1296 = vst [vmem:[#allocation11 + $0x1c8] sm:$0xff] %v1228
    %1297 = vst [vmem:[#allocation11 + $0x1d0] sm:$0xff] %v1229
    %1298 = vst [vmem:[#allocation11 + $0x1d8] sm:$0xff] %v1230
    %1299 = vst [vmem:[#allocation11 + $0x1e0] sm:$0xff] %v1231
    %1300 = vst [vmem:[#allocation11 + $0x1e8] sm:$0xff] %v1232
    %1301 = vst [vmem:[#allocation11 + $0x1f0] sm:$0xff] %v1233
    %1302 = vst [vmem:[#allocation11 + $0x1f8] sm:$0xff] %v1234
    %1303 = vst [vmem:[#allocation11 + $0x200] sm:$0xff] %v1235
    %1304 = vst [vmem:[#allocation11 + $0x208] sm:$0xff] %v1236
    %1305 = vst [vmem:[#allocation11 + $0x210] sm:$0xff] %v1237
    %1306 = vst [vmem:[#allocation11 + $0x218] sm:$0xff] %v1238
    // Predicated region
    $region42: #{tpu_custom_call.1} parent=1 // pred_check
      _
    $region43: #{tpu_custom_call.1} parent=1 // pred_check_branch
      %1308 = sbr.rel (0) target = $region45
    $region44: #{tpu_custom_call.1} parent=1 // pred_region
      %s1310 = ssub.s32 8704, 8704
      %1311 = vsyncadd [#allocation4], %s1310
      %s1312 = sshll.u32 [#allocation11], 4
      %s1313 = int_to_ptr.vmem [resolvable:$true] %s1312
      %1318 = dma.vmem_to_hbm [thread:$0]  %s1313, 8704, %s5, [#allocation4], 256, 256, 16
    $region45: #{tpu_custom_call.1} parent=1 // pred_fallthru
      _
    // Predicated region
    $region46: #{tpu_custom_call.1} parent=1 // pred_check
      _
    $region47: #{tpu_custom_call.1} parent=1 // pred_check_branch
      %1320 = sbr.rel (0) target = $region49
    $region48: #{tpu_custom_call.1} parent=1 // pred_region
      %1321 = dma.done [#allocation4], 8704
    $region49: #{tpu_custom_call.1} parent=1 // pred_fallthru
      _
    %1322 = vsyncpa [#allocation3], 1
    %1323 = vsyncpa [#allocation6], 1
    %1324 = vsyncpa [#allocation9], 1
    %1325 = vsyncpa [#allocation4], 1

</llo_original>
